<compile_context>
chip_gen: v7x
topology: tpu7x:2x2x1
jax: 0.10.0
libtpu: 0.0.40
codegen_flags: <defaults>
</compile_context>

<pallas_src>
import functools
import math

import jax
import jax.numpy as jnp
from jax.experimental import pallas as pl
from jax.experimental.pallas import tpu as pltpu

_HALO = 128  # halo width (lanes) covering the per-tap shift dk = k // stride


def _stride_pool1d_kernel(w_ref, b_ref, xm_ref, xh_ref, o_ref, win_ref, *,
                          kernel_size, stride, tl, apply_relu):
    # w_ref  : (K, C_out, C_in)        resident weights
    # b_ref  : (C_out, 1)              f32 bias column (resident)
    # xm_ref : (1, S, C_in, TL)        main stride-phase window tile
    # xh_ref : (1, S, C_in, 128)       halo: next 128 q-columns
    # o_ref  : (1, C_out, TL)          lane-dense output tile
    # win_ref: (S, C_in, TL + 128)     VMEM scratch: assembled window
    win_ref[:, :, :tl] = xm_ref[0]
    win_ref[:, :, tl:] = xh_ref[0]

    c_out = o_ref.shape[1]
    acc = jnp.zeros((c_out, tl), jnp.float32)
    # K is tiny and static -> unrolled taps.  win[r, c, t] = x_pad[c, (q0+t)*S + r],
    # so tap k (= dk*S + rk) for output o is win[rk, :, o + dk].
    for k in range(kernel_size):
        rk, dk = k % stride, k // stride
        xk = win_ref[rk, :, dk:dk + tl]                               # (C_in, TL)
        acc += jnp.dot(w_ref[k], xk, preferred_element_type=jnp.float32)
    acc = acc + b_ref[...]
    if apply_relu:
        acc = jnp.maximum(acc, 0.0)
    o_ref[0] = acc.astype(o_ref.dtype)


def stride_pool1d(x, weight, bias, *, stride, padding=0, activation="ReLU",
                  batch_norm=False, lane_tile=1024):
    """Strided Conv1d + bias + ReLU.  x: (B, C_in, L_in) -> (B, C_out, L_out)."""
    if batch_norm:
        # TODO(synk): BatchNorm1d (running stats) not implemented.
        raise NotImplementedError("batch_norm=True is not supported")
    if activation in ("ReLU", "relu"):
        apply_relu = True
    elif activation is None:
        apply_relu = False
    else:
        # TODO(synk): non-ReLU activations not implemented.
        raise NotImplementedError(f"activation {activation!r} is not supported")

    B, C_in, L_in = x.shape
    C_out, C_in_w, K = weight.shape
    S, P = int(stride), int(padding)
    assert C_in_w == C_in, (C_in_w, C_in)
    assert K >= 1 and S >= 1
    L_out = (L_in + 2 * P - K) // S + 1
    assert L_out > 0, "conv output length must be positive"
    assert (K - 1) // S < _HALO, "kernel/stride ratio too large for 128-lane halo"

    def _round_up(a, m):
        return ((a + m - 1) // m) * m

    # ---- lane tile: multiple of 128, capped by L_out and a VMEM budget ----
    lane_tile = max(128, _round_up(int(lane_tile), 128))
    try:
        vmem_cap = int(getattr(pltpu.get_tpu_info(), "vmem_capacity_bytes", 64 << 20))
    except Exception:
        vmem_cap = 64 << 20
    vmem_ceiling = (3 * vmem_cap) // 4          # ~48 MiB on v7x, ~96 MiB on v5e/v6e
    itemsize = jnp.dtype(x.dtype).itemsize
    per_lane = itemsize * (3 * S * C_in + 2 * C_out)   # dbl-buffered main + scratch + dbl-buffered out
    tl_budget = max(128, ((vmem_ceiling // 4) // max(per_lane, 1)) // 128 * 128)
    TL = min(lane_tile, _round_up(L_out, 128), tl_budget)

    num_j = pl.cdiv(L_out, TL)
    L_out_pad = num_j * TL

    # ---- single fused copy: stride-phase layout x_prep[b,r,c,q] = x_pad[b,c,q*S+r] ----
    Lq = L_out_pad + _HALO
    Lp = Lq * S
    pad_right = Lp - L_in - P
    assert pad_right >= P, (pad_right, P)
    x_pad = jnp.pad(x, ((0, 0), (0, 0), (P, pad_right)))
    x_prep = x_pad.reshape(B, C_in, Lq, S).transpose(0, 3, 1, 2)      # (B, S, C_in, Lq)

    w_prep = jnp.transpose(weight, (2, 0, 1))                          # (K, C_out, C_in)
    b_col = bias.reshape(C_out, 1).astype(jnp.float32)

    # VMEM budget: double-buffered main/halo/out tiles + window scratch + resident weights.
    need = itemsize * (2 * S * C_in * TL + 2 * S * C_in * _HALO + 2 * C_out * TL
                       + S * C_in * (TL + _HALO) + K * C_out * C_in) + 4 * C_out
    vmem_limit = int(min(vmem_ceiling, max(4 << 20, 4 * need)))

    kernel = functools.partial(_stride_pool1d_kernel, kernel_size=K, stride=S,
                               tl=TL, apply_relu=apply_relu)

    out = pl.pallas_call(
        kernel,
        out_shape=jax.ShapeDtypeStruct((B, C_out, L_out_pad), x.dtype),
        grid_spec=pltpu.PrefetchScalarGridSpec(
            num_scalar_prefetch=0,
            grid=(B, num_j),
            in_specs=[
                pl.BlockSpec((K, C_out, C_in), lambda b, j: (0, 0, 0)),    # weights (resident)
                pl.BlockSpec((C_out, 1), lambda b, j: (0, 0)),             # bias (resident)
                pl.BlockSpec((1, S, C_in, TL), lambda b, j: (b, 0, 0, j)),  # main window tile
                pl.BlockSpec((1, S, C_in, _HALO),
                             lambda b, j: (b, 0, 0, (j + 1) * (TL // _HALO))),  # halo
            ],
            out_specs=pl.BlockSpec((1, C_out, TL), lambda b, j: (b, 0, j)),
            scratch_shapes=[pltpu.VMEM((S, C_in, TL + _HALO), x.dtype)],
        ),
        compiler_params=pltpu.CompilerParams(
            dimension_semantics=("parallel", "parallel"),
            vmem_limit_bytes=vmem_limit,
        ),
        cost_estimate=pl.CostEstimate(
            flops=2 * C_out * C_in * K * B * L_out,
            transcendentals=0,
            bytes_accessed=itemsize * (B * S * C_in * Lq + B * C_out * L_out_pad
                                       + K * C_out * C_in) + 4 * C_out,
        ),
    )(w_prep, b_col, x_prep, x_prep)

    # Output is already in (B, C_out, L_out) layout; only trim lane padding if the
    # output length is not tile-aligned (no reshape/transpose post-processing).
    if L_out_pad != L_out:
        out = out[:, :, :L_out]
    return out


if __name__ == "__main__":
    key = jax.random.PRNGKey(0)
    B, C, L = 2, 4, 16
    pool_kernel, pool_stride, pad = 3, 2, 1

    kx, kw, kb = jax.random.split(key, 3)
    x = jax.random.normal(kx, (B, C, L), dtype=jnp.float32)
    fan_in = C * pool_kernel
    bound = 1.0 / math.sqrt(fan_in)
    w = jax.random.uniform(kw, (C, C, pool_kernel), minval=-bound, maxval=bound, dtype=jnp.float32)
    b = jax.random.uniform(kb, (C,), minval=-bound, maxval=bound, dtype=jnp.float32)

    fn = jax.jit(functools.partial(stride_pool1d, stride=pool_stride, padding=pad))
    out = jax.block_until_ready(fn(x, w, b))

    # Reference: plain-XLA conv1d + bias + ReLU (matches torch Conv1d + nn.ReLU).
    ref = jax.lax.conv_general_dilated(
        x, w, window_strides=(pool_stride,), padding=[(pad, pad)],
        dimension_numbers=("NCH", "OIH", "NCH"))
    ref = jnp.maximum(ref + b[None, :, None], 0.0)

    L_out = (L + 2 * pad - pool_kernel) // pool_stride + 1
    assert out.shape == (B, C, L_out), out.shape
    assert jnp.allclose(out, ref, atol=1e-4, rtol=1e-4), (out, ref)

    print("KERNEL_OK")
</pallas_src>

<mosaic_0001>
module attributes {stable_mosaic.version = 11 : i64} {
  func.func @_stride_pool1d_kernel(%arg0: i32, %arg1: i32, %arg2: memref<3x4x4xf32, #tpu.memory_space<vmem>>, %arg3: memref<4x1xf32, #tpu.memory_space<vmem>>, %arg4: memref<1x2x4x128xf32, #tpu.memory_space<vmem>>, %arg5: memref<1x2x4x128xf32, #tpu.memory_space<vmem>>, %arg6: memref<1x4x128xf32, #tpu.memory_space<vmem>>, %arg7: memref<2x4x256xf32, #tpu.memory_space<vmem>>) attributes {dimension_semantics = [#tpu.dimension_semantics<parallel>, #tpu.dimension_semantics<parallel>], iteration_bounds = array<i64: 2, 1>, scalar_prefetch = 0 : i64, scratch_operands = 1 : i64, tpu.core_type = #tpu.core_type<tc>, window_params = [{pipeline_mode = #tpu.pipeline_mode<synchronous>, transform_indices = @transform_0, window_bounds = array<i64: 3, 4, 4>}, {pipeline_mode = #tpu.pipeline_mode<synchronous>, transform_indices = @transform_1, window_bounds = array<i64: 4, 1>}, {transform_indices = @transform_2, window_bounds = array<i64: 1, 2, 4, 128>}, {transform_indices = @transform_3, window_bounds = array<i64: 1, 2, 4, 128>}, {transform_indices = @transform_4, window_bounds = array<i64: 1, 4, 128>}]} {
    %c0 = arith.constant 0 : index
    %c0_0 = arith.constant 0 : index
    %c0_1 = arith.constant 0 : index
    %c0_2 = arith.constant 0 : index
    %0 = vector.load %arg4[%c0, %c0_0, %c0_1, %c0_2] : memref<1x2x4x128xf32, #tpu.memory_space<vmem>>, vector<1x2x4x128xf32>
    %1 = vector.shape_cast %0 : vector<1x2x4x128xf32> to vector<2x4x128xf32>
    %c0_3 = arith.constant 0 : index
    %c0_4 = arith.constant 0 : index
    %c0_5 = arith.constant 0 : index
    %2 = vector.load %arg7[%c0_3, %c0_4, %c0_5] : memref<2x4x256xf32, #tpu.memory_space<vmem>>, vector<2x4x128xf32>
    tpu.vector_store %arg7[%c0_3, %c0_4, %c0_5], %1 {strides = array<i32>} : memref<2x4x256xf32, #tpu.memory_space<vmem>>, vector<2x4x128xf32>,
    %c0_6 = arith.constant 0 : index
    %c0_7 = arith.constant 0 : index
    %c0_8 = arith.constant 0 : index
    %c0_9 = arith.constant 0 : index
    %3 = vector.load %arg5[%c0_6, %c0_7, %c0_8, %c0_9] : memref<1x2x4x128xf32, #tpu.memory_space<vmem>>, vector<1x2x4x128xf32>
    %4 = vector.shape_cast %3 : vector<1x2x4x128xf32> to vector<2x4x128xf32>
    %c0_10 = arith.constant 0 : index
    %c0_11 = arith.constant 0 : index
    %c128 = arith.constant 128 : index
    %5 = vector.load %arg7[%c0_10, %c0_11, %c128] : memref<2x4x256xf32, #tpu.memory_space<vmem>>, vector<2x4x128xf32>
    tpu.vector_store %arg7[%c0_10, %c0_11, %c128], %4 {strides = array<i32>} : memref<2x4x256xf32, #tpu.memory_space<vmem>>, vector<2x4x128xf32>,
    %cst = arith.constant 0.000000e+00 : f32
    %6 = vector.broadcast %cst : f32 to vector<4x128xf32>
    %c0_12 = arith.constant 0 : index
    %c0_13 = arith.constant 0 : index
    %c0_14 = arith.constant 0 : index
    %7 = vector.load %arg7[%c0_12, %c0_13, %c0_14] : memref<2x4x256xf32, #tpu.memory_space<vmem>>, vector<1x4x128xf32>
    %8 = vector.shape_cast %7 : vector<1x4x128xf32> to vector<4x128xf32>
    %c0_15 = arith.constant 0 : index
    %c0_16 = arith.constant 0 : index
    %c0_17 = arith.constant 0 : index
    %9 = vector.load %arg2[%c0_15, %c0_16, %c0_17] : memref<3x4x4xf32, #tpu.memory_space<vmem>>, vector<1x4x4xf32>
    %10 = vector.shape_cast %9 : vector<1x4x4xf32> to vector<4x4xf32>
    %cst_18 = arith.constant dense<0.000000e+00> : vector<4x128xf32>
    %11 = tpu.matmul %10, %8, %cst_18 {dimension_numbers = #tpu.dot_dimension_numbers<[1], [0], [0], [1], [0, 0, 1, 1], [], []>} : vector<4x4xf32>, vector<4x128xf32>, vector<4x128xf32> -> vector<4x128xf32>
    %12 = arith.addf %6, %11 : vector<4x128xf32>
    %c1 = arith.constant 1 : index
    %c0_19 = arith.constant 0 : index
    %c0_20 = arith.constant 0 : index
    %13 = vector.load %arg7[%c1, %c0_19, %c0_20] : memref<2x4x256xf32, #tpu.memory_space<vmem>>, vector<1x4x128xf32>
    %14 = vector.shape_cast %13 : vector<1x4x128xf32> to vector<4x128xf32>
    %c1_21 = arith.constant 1 : index
    %c0_22 = arith.constant 0 : index
    %c0_23 = arith.constant 0 : index
    %15 = vector.load %arg2[%c1_21, %c0_22, %c0_23] : memref<3x4x4xf32, #tpu.memory_space<vmem>>, vector<1x4x4xf32>
    %16 = vector.shape_cast %15 : vector<1x4x4xf32> to vector<4x4xf32>
    %cst_24 = arith.constant dense<0.000000e+00> : vector<4x128xf32>
    %17 = tpu.matmul %16, %14, %cst_24 {dimension_numbers = #tpu.dot_dimension_numbers<[1], [0], [0], [1], [0, 0, 1, 1], [], []>} : vector<4x4xf32>, vector<4x128xf32>, vector<4x128xf32> -> vector<4x128xf32>
    %18 = arith.addf %12, %17 : vector<4x128xf32>
    %c0_25 = arith.constant 0 : index
    %c0_26 = arith.constant 0 : index
    %c1_27 = arith.constant 1 : index
    %19 = vector.load %arg7[%c0_25, %c0_26, %c1_27] : memref<2x4x256xf32, #tpu.memory_space<vmem>>, vector<1x4x128xf32>
    %20 = vector.shape_cast %19 : vector<1x4x128xf32> to vector<4x128xf32>
    %c2 = arith.constant 2 : index
    %c0_28 = arith.constant 0 : index
    %c0_29 = arith.constant 0 : index
    %21 = vector.load %arg2[%c2, %c0_28, %c0_29] : memref<3x4x4xf32, #tpu.memory_space<vmem>>, vector<1x4x4xf32>
    %22 = vector.shape_cast %21 : vector<1x4x4xf32> to vector<4x4xf32>
    %cst_30 = arith.constant dense<0.000000e+00> : vector<4x128xf32>
    %23 = tpu.matmul %22, %20, %cst_30 {dimension_numbers = #tpu.dot_dimension_numbers<[1], [0], [0], [1], [0, 0, 1, 1], [], []>} : vector<4x4xf32>, vector<4x128xf32>, vector<4x128xf32> -> vector<4x128xf32>
    %24 = arith.addf %18, %23 : vector<4x128xf32>
    %c0_31 = arith.constant 0 : index
    %c0_32 = arith.constant 0 : index
    %25 = vector.load %arg3[%c0_31, %c0_32] : memref<4x1xf32, #tpu.memory_space<vmem>>, vector<4x1xf32>
    %26 = vector.broadcast %25 : vector<4x1xf32> to vector<4x128xf32>
    %27 = arith.addf %24, %26 : vector<4x128xf32>
    %cst_33 = arith.constant 0.000000e+00 : f32
    %28 = vector.broadcast %cst_33 : f32 to vector<4x128xf32>
    %29 = arith.maximumf %27, %28 : vector<4x128xf32>
    %c0_34 = arith.constant 0 : index
    %c0_35 = arith.constant 0 : index
    %c0_36 = arith.constant 0 : index
    %30 = vector.load %arg6[%c0_34, %c0_35, %c0_36] : memref<1x4x128xf32, #tpu.memory_space<vmem>>, vector<1x4x128xf32>
    %31 = vector.shape_cast %30 : vector<1x4x128xf32> to vector<4x128xf32>
    %32 = vector.shape_cast %29 : vector<4x128xf32> to vector<1x4x128xf32>
    tpu.vector_store %arg6[%c0_34, %c0_35, %c0_36], %32 {strides = array<i32>} : memref<1x4x128xf32, #tpu.memory_space<vmem>>, vector<1x4x128xf32>,
    return
  }
  func.func @transform_0(%arg0: i32, %arg1: i32) -> (i32, i32, i32) {
    %c0_i32 = arith.constant 0 : i32
    %c0_i32_0 = arith.constant 0 : i32
    %c0_i32_1 = arith.constant 0 : i32
    %c0_i32_2 = arith.constant 0 : i32
    return %c0_i32, %c0_i32_0, %c0_i32_1 : i32, i32, i32
  }
  func.func @transform_1(%arg0: i32, %arg1: i32) -> (i32, i32) {
    %c0_i32 = arith.constant 0 : i32
    %c0_i32_0 = arith.constant 0 : i32
    %c0_i32_1 = arith.constant 0 : i32
    return %c0_i32, %c0_i32_0 : i32, i32
  }
  func.func @transform_2(%arg0: i32, %arg1: i32) -> (i32, i32, i32, i32) {
    %c0_i32 = arith.constant 0 : i32
    %c0_i32_0 = arith.constant 0 : i32
    %c0_i32_1 = arith.constant 0 : i32
    return %arg0, %c0_i32, %c0_i32_0, %arg1 : i32, i32, i32, i32
  }
  func.func @transform_3(%arg0: i32, %arg1: i32) -> (i32, i32, i32, i32) {
    %c1_i32 = arith.constant 1 : i32
    %0 = arith.addi %arg1, %c1_i32 : i32
    %c1_i32_0 = arith.constant 1 : i32
    %1 = arith.muli %0, %c1_i32_0 : i32
    %c0_i32 = arith.constant 0 : i32
    %c0_i32_1 = arith.constant 0 : i32
    %c0_i32_2 = arith.constant 0 : i32
    return %arg0, %c0_i32, %c0_i32_1, %1 : i32, i32, i32, i32
  }
  func.func @transform_4(%arg0: i32, %arg1: i32) -> (i32, i32, i32) {
    %c0_i32 = arith.constant 0 : i32
    %c0_i32_0 = arith.constant 0 : i32
    return %arg0, %c0_i32, %arg1 : i32, i32, i32
  }
}

</mosaic_0001>

<llo_original>
// kernel: stride_pool1d.1
$region0: #{stride_pool1d.1}
  #allocation0 [shape = 'u32[]', space=smem, size = 0x4, offset = 0x4, fixed_abs, tag = 'smem constant byte address 0x4 - core index']
  #allocation1 [shape = 'u32[144,128]{1,0:T(1,128)}', space=vmem, size = 0x12000, scoped, tag = 'internal scratch']
  #allocation2 [shape = 'f32[2,4,256]{2,1,0:T(4,128)}', space=vmem, size = 0x2000, scoped, tag = 'scratch operand']
  %s0 = inlined_call_operand.vmem [shape: f32[3,4,4], index: 0, kind: input, shape index: {}]
  %s1 = inlined_call_operand.vmem [shape: f32[4,1], index: 1, kind: input, shape index: {}]
  %s2 = inlined_call_operand.vmem [shape: f32[2,2,4,256], index: 2, kind: input, shape index: {}, may-alias: {2,3}]
  %s3 = inlined_call_operand.vmem [shape: f32[2,2,4,256], index: 3, kind: input, shape index: {}, may-alias: {2,3}]
  %s4 = inlined_call_operand.hbm [shape: f32[2,4,128], index: 4, kind: output, shape index: {}]
  %s5 = sld [smem:[#allocation0]]
  $region131: #{stride_pool1d.1} parent=0
    _
  %s7 = ssub.s32 1, %s5
  %s8 = scalar_select 0, %s7, %s5
  $region1: #{stride_pool1d.1} parent=0
    #allocation3 [shape = 'u8[8192]{0}', space=vmem, size = 0x2000, scoped, tag = 'input window, operand 2']
    #allocation4 [shape = 'u8[8192]{0}', space=vmem, size = 0x2000, scoped, tag = 'input window, operand 3']
    #allocation5 [shape = 'u8[4096]{0}', space=vmem, size = 0x1000, scoped, tag = 'output window, operand 0']
    #allocation6 [shape = 's32[2]{0}', space=sflag, size = 0x8, scoped, tag = 'scoped memory for stride_pool1d.1']
    %9 = vsyncpa [#allocation6], 0
    %s10 = scalar_lea.sflag [#allocation6], 1
    %11 = vsyncpa %s10, 0
    loop: start=0, step=1, limit=4
    $region2: #{stride_pool1d.1} parent=1 // loop_pre_header
      _
    $region3: #{stride_pool1d.1} parent=1 // loop_header
      %s13 = sphi 0, %s17
      %p14 = scmp.ge.s32.totalorder %s13, 4
      %s20 = sphi 0, %s32
      %s21 = sphi 0, %s28
      %s22 = sphi 0, %s20
      %s23 = sphi 0, %s21
      %s24 = sphi 0, %s22
      %s25 = sphi 0, %s23
      %s33 = sphi 0, %s33
      %s35 = sphi 0, %s33
      %s36 = sphi 0, %s35
      %s50 = sphi 0, %s36
      %s54 = sphi 0, %s54
      %s56 = sphi 0, %s54
      %s57 = sphi 0, %s56
      %s71 = sphi 0, %s57
      %s79 = sphi 0, %s81
      %s82 = sphi 0, %s79
      %s83 = sphi 0, %s82
      %s99 = sphi 0, %s83
      %s109 = sphi 0, %s111
      %s112 = sphi 0, %s109
      %s113 = sphi 0, %s112
      %s129 = sphi 0, %s113
      %s137 = sphi 0, %s139
      %s140 = sphi 0, %s137
      %s141 = sphi 0, %s140
      %s157 = sphi 0, %s141
    $region4: #{stride_pool1d.1} parent=1 // loop_header_branch
      %16 = sbr.rel (%p14) target = $region8
    $region5: #{stride_pool1d.1} parent=1 // loop_body
      %s18 = ssub.s32 %s13, 1
      %s19 = ssub.s32 %s13, 2
      %s26 = sadd.s32 1, %s21
      %p27 = scmp.ge.s32.totalorder %s26, 1
      %s28 = scalar_select %p27, 0, %s26
      %s29 = sadd.s32 1, %s20
      %s30 = scalar_select %p27, %s29, %s20
      %p31 = scmp.ge.s32.totalorder %s30, 2
      %s32 = scalar_select %p31, 0, %s30
      %s34 = sadd.s32 %s33, 1
      %p37 = scmp.eq.s32.totalorder %s13, 1
      %p38 = scmp.ne.s32.totalorder %s33, %s35
      %p39 = scmp.eq.s32.totalorder %s13, 0
      %p40 = por %p38, %p39
      %p41 = scmp.ne.s32.totalorder %s33, %s35
      %p42 = scmp.eq.s32.totalorder %s18, 1
      %p43 = por %p41, %p42
      %p44 = scmp.ne.s32.totalorder %s35, %s36
      %p45 = scmp.eq.s32.totalorder %s18, 0
      %p46 = por %p44, %p45
      %p47 = scmp.ne.s32.totalorder %s35, %s36
      %p48 = scmp.eq.s32.totalorder %s19, 1
      %p49 = por %p47, %p48
      %p51 = scmp.ne.s32.totalorder %s36, %s50
      %p52 = scmp.eq.s32.totalorder %s19, 0
      %p53 = por %p51, %p52
      %s55 = sadd.s32 %s54, 1
      %p58 = scmp.eq.s32.totalorder %s13, 1
      %p59 = scmp.ne.s32.totalorder %s54, %s56
      %p60 = scmp.eq.s32.totalorder %s13, 0
      %p61 = por %p59, %p60
      %p62 = scmp.ne.s32.totalorder %s54, %s56
      %p63 = scmp.eq.s32.totalorder %s18, 1
      %p64 = por %p62, %p63
      %p65 = scmp.ne.s32.totalorder %s56, %s57
      %p66 = scmp.eq.s32.totalorder %s18, 0
      %p67 = por %p65, %p66
      %p68 = scmp.ne.s32.totalorder %s56, %s57
      %p69 = scmp.eq.s32.totalorder %s19, 1
      %p70 = por %p68, %p69
      %p72 = scmp.ne.s32.totalorder %s57, %s71
      %p73 = scmp.eq.s32.totalorder %s19, 0
      %p74 = por %p72, %p73
      %s75 = ssub.s32 %s20, %s32
      %s76 = ssub.s32 %s21, %s28
      %s77 = sor.u32 %s75, %s76
      %p78 = scmp.eq.s32.totalorder %s77, 0
      %s80 = sadd.s32 %s79, 1
      %s81 = scalar_select %p78, %s79, %s80
      %p84 = pneg %p78
      %p85 = scmp.eq.s32.totalorder %s13, 1
      %p86 = por %p84, %p85
      %p87 = scmp.ne.s32.totalorder %s79, %s82
      %p88 = scmp.eq.s32.totalorder %s13, 0
      %p89 = por %p87, %p88
      %p90 = scmp.ne.s32.totalorder %s79, %s82
      %p91 = scmp.eq.s32.totalorder %s18, 1
      %p92 = por %p90, %p91
      %p93 = scmp.ne.s32.totalorder %s82, %s83
      %p94 = scmp.eq.s32.totalorder %s18, 0
      %p95 = por %p93, %p94
      %p96 = scmp.ne.s32.totalorder %s82, %s83
      %p97 = scmp.eq.s32.totalorder %s19, 1
      %p98 = por %p96, %p97
      %p100 = scmp.ne.s32.totalorder %s83, %s99
      %p101 = scmp.eq.s32.totalorder %s19, 0
      %p102 = por %p100, %p101
      %s103 = sadd.s32 %s21, 1
      %s104 = sadd.s32 %s28, 1
      %s105 = ssub.s32 %s20, %s32
      %s106 = ssub.s32 %s103, %s104
      %s107 = sor.u32 %s105, %s106
      %p108 = scmp.eq.s32.totalorder %s107, 0
      %s110 = sadd.s32 %s109, 1
      %s111 = scalar_select %p108, %s109, %s110
      %p114 = pneg %p108
      %p115 = scmp.eq.s32.totalorder %s13, 1
      %p116 = por %p114, %p115
      %p117 = scmp.ne.s32.totalorder %s109, %s112
      %p118 = scmp.eq.s32.totalorder %s13, 0
      %p119 = por %p117, %p118
      %p120 = scmp.ne.s32.totalorder %s109, %s112
      %p121 = scmp.eq.s32.totalorder %s18, 1
      %p122 = por %p120, %p121
      %p123 = scmp.ne.s32.totalorder %s112, %s113
      %p124 = scmp.eq.s32.totalorder %s18, 0
      %p125 = por %p123, %p124
      %p126 = scmp.ne.s32.totalorder %s112, %s113
      %p127 = scmp.eq.s32.totalorder %s19, 1
      %p128 = por %p126, %p127
      %p130 = scmp.ne.s32.totalorder %s113, %s129
      %p131 = scmp.eq.s32.totalorder %s19, 0
      %p132 = por %p130, %p131
      %s133 = ssub.s32 %s20, %s32
      %s134 = ssub.s32 %s21, %s28
      %s135 = sor.u32 %s133, %s134
      %p136 = scmp.eq.s32.totalorder %s135, 0
      %s138 = sadd.s32 %s137, 1
      %s139 = scalar_select %p136, %s137, %s138
      %p142 = pneg %p136
      %p143 = scmp.eq.s32.totalorder %s13, 1
      %p144 = por %p142, %p143
      %p145 = scmp.ne.s32.totalorder %s137, %s140
      %p146 = scmp.eq.s32.totalorder %s13, 0
      %p147 = por %p145, %p146
      %p148 = scmp.ne.s32.totalorder %s137, %s140
      %p149 = scmp.eq.s32.totalorder %s18, 1
      %p150 = por %p148, %p149
      %p151 = scmp.ne.s32.totalorder %s140, %s141
      %p152 = scmp.eq.s32.totalorder %s18, 0
      %p153 = por %p151, %p152
      %p154 = scmp.ne.s32.totalorder %s140, %s141
      %p155 = scmp.eq.s32.totalorder %s19, 1
      %p156 = por %p154, %p155
      %p158 = scmp.ne.s32.totalorder %s141, %s157
      %p159 = scmp.eq.s32.totalorder %s19, 0
      %p160 = por %p158, %p159
      %p161 = scmp.le.s32.totalorder 1, %s13
      %p162 = scmp.lt.s32.totalorder %s13, 3
      %p163 = pnand %p161, %p162
      %p164 = pneg %p163
      // Predicated region
      $region9: #{stride_pool1d.1} parent=5 // pred_check
        _
      $region10: #{stride_pool1d.1} parent=5 // pred_check_branch
        %166 = sbr.rel (%p163) target = $region12
      $region11: #{stride_pool1d.1} parent=5 // pred_region
        %s167 = ssub.s32 %s13, 1
        // Predicated region
        $region13: #{stride_pool1d.1} parent=11 // pred_check
          %p168 = pneg %p46
        $region14: #{stride_pool1d.1} parent=11 // pred_check_branch
          %170 = sbr.rel (%p168) target = $region16
        $region15: #{stride_pool1d.1} parent=11 // pred_region
          _
        $region16: #{stride_pool1d.1} parent=11 // pred_fallthru
          _
        // Predicated region
        $region17: #{stride_pool1d.1} parent=11 // pred_check
          %p171 = pneg %p67
        $region18: #{stride_pool1d.1} parent=11 // pred_check_branch
          %173 = sbr.rel (%p171) target = $region20
        $region19: #{stride_pool1d.1} parent=11 // pred_region
          _
        $region20: #{stride_pool1d.1} parent=11 // pred_fallthru
          _
      $region12: #{stride_pool1d.1} parent=5 // pred_fallthru
        _
      %p174 = scmp.lt.s32.totalorder %s13, 2
      // Predicated region
      $region21: #{stride_pool1d.1} parent=5 // pred_check
        %p175 = pneg %p174
      $region22: #{stride_pool1d.1} parent=5 // pred_check_branch
        %177 = sbr.rel (%p175) target = $region24
      $region23: #{stride_pool1d.1} parent=5 // pred_region
        // Predicated region
        $region25: #{stride_pool1d.1} parent=23 // pred_check
          %p178 = pneg %p89
        $region26: #{stride_pool1d.1} parent=23 // pred_check_branch
          %180 = sbr.rel (%p178) target = $region28
        $region27: #{stride_pool1d.1} parent=23 // pred_region
          %s181 = sand.u32 %s79, 1
          %s182 = sand.u32 %s79, 1
          %s183 = smul.addr %s182, 8
          %s184 = scalar_lea.vmem [#allocation3], %s183
          %s185 = smul.addr %s20, 4
          %s186 = sadd.s32 %s21, %s185
          %s187 = smul.addr %s186, 4
          %s188 = scalar_lea.vmem %s2, %s187
          // Predicated region
          $region29: #{stride_pool1d.1} parent=27 // pred_check
            _
          $region30: #{stride_pool1d.1} parent=27 // pred_check_branch
            %190 = sbr.rel (0) target = $region32
          $region31: #{stride_pool1d.1} parent=27 // pred_region
            // Predicated region
            $region33: #{stride_pool1d.1} parent=31 // pred_check
              _
            $region34: #{stride_pool1d.1} parent=31 // pred_check_branch
              %192 = sbr.rel target = $region36
            $region35: #{stride_pool1d.1} parent=31 // pred_region
              // Predicated region
              $region48: #{stride_pool1d.1} parent=35 // pred_check
                _
              $region49: #{stride_pool1d.1} parent=35 // pred_check_branch
                %209 = sbr.rel (0) target = $region51
              $region50: #{stride_pool1d.1} parent=35 // pred_region
                loop: start=0, step=1, limit=1
                $region52: #{stride_pool1d.1} parent=50 // loop_pre_header
                  _
                $region53: #{stride_pool1d.1} parent=50 // loop_header
                  %s211 = sphi 0, %s215
                  %p212 = scmp.ge.s32.totalorder %s211, 1
                  %s216 = sphi %s188, %s188
                  %s217 = sphi %s184, %s184
                $region54: #{stride_pool1d.1} parent=50 // loop_header_branch
                  %214 = sbr.rel (%p212) target = $region58
                $region55: #{stride_pool1d.1} parent=50 // loop_body
                  _
                $region56: #{stride_pool1d.1} parent=50 // loop_footer
                  %s215 = sadd.s32 1, %s211
                $region57: #{stride_pool1d.1} parent=50 // loop_footer_branch
                  %210 = sbr.rel target = $region53
                $region58: #{stride_pool1d.1} parent=50 // loop_exit
                  _
                loop: start=0, step=1, limit=1
                $region59: #{stride_pool1d.1} parent=50 // loop_pre_header
                  _
                $region60: #{stride_pool1d.1} parent=50 // loop_header
                  %s220 = sphi 0, %s224
                  %p221 = scmp.ge.s32.totalorder %s220, 1
                  %s225 = sphi %s188, %s188
                  %s226 = sphi %s184, %s184
                $region61: #{stride_pool1d.1} parent=50 // loop_header_branch
                  %223 = sbr.rel (%p221) target = $region65
                $region62: #{stride_pool1d.1} parent=50 // loop_body
                  %v227 = vld [vmem:[%s225] sm:$0xf]
                  %228 = vst [vmem:[%s226] sm:$0xf] %v227
                  %v229 = vld [vmem:[%s225 + $0x8] sm:$0xf]
                  %230 = vst [vmem:[%s226 + $0x4] sm:$0xf] %v229
                $region63: #{stride_pool1d.1} parent=50 // loop_footer
                  %s224 = sadd.s32 1, %s220
                $region64: #{stride_pool1d.1} parent=50 // loop_footer_branch
                  %219 = sbr.rel target = $region60
                $region65: #{stride_pool1d.1} parent=50 // loop_exit
                  _
              $region51: #{stride_pool1d.1} parent=35 // pred_fallthru
                _
            $region36: #{stride_pool1d.1} parent=31 // pred_fallthru
              _
            // Predicated region
            $region37: #{stride_pool1d.1} parent=31 // pred_check
              _
            $region38: #{stride_pool1d.1} parent=31 // pred_check_branch
              %194 = sbr.rel (0) target = $region40
            $region39: #{stride_pool1d.1} parent=31 // pred_region
              loop: start=0, step=1, limit=1
              $region41: #{stride_pool1d.1} parent=39 // loop_pre_header
                _
              $region42: #{stride_pool1d.1} parent=39 // loop_header
                %s197 = sphi 0, %s201
                %p198 = scmp.ge.s32.totalorder %s197, 1
                %s202 = sphi %s188, %s188
                %s203 = sphi %s184, %s184
              $region43: #{stride_pool1d.1} parent=39 // loop_header_branch
                %200 = sbr.rel (%p198) target = $region47
              $region44: #{stride_pool1d.1} parent=39 // loop_body
                %v204 = vld [vmem:[%s202] sm:$0xf]
                %205 = vst [vmem:[%s203] sm:$0xf] %v204
                %v206 = vld [vmem:[%s202 + $0x8] sm:$0xf]
                %207 = vst [vmem:[%s203 + $0x4] sm:$0xf] %v206
              $region45: #{stride_pool1d.1} parent=39 // loop_footer
                %s201 = sadd.s32 1, %s197
              $region46: #{stride_pool1d.1} parent=39 // loop_footer_branch
                %196 = sbr.rel target = $region42
              $region47: #{stride_pool1d.1} parent=39 // loop_exit
                _
            $region40: #{stride_pool1d.1} parent=31 // pred_fallthru
              _
          $region32: #{stride_pool1d.1} parent=27 // pred_fallthru
            _
          %231 = vnop
        $region28: #{stride_pool1d.1} parent=23 // pred_fallthru
          _
        // Predicated region
        $region66: #{stride_pool1d.1} parent=23 // pred_check
          %p232 = pneg %p119
        $region67: #{stride_pool1d.1} parent=23 // pred_check_branch
          %234 = sbr.rel (%p232) target = $region69
        $region68: #{stride_pool1d.1} parent=23 // pred_region
          %s235 = sand.u32 %s109, 1
          %s236 = sand.u32 %s109, 1
          %s237 = smul.addr %s236, 8
          %s238 = scalar_lea.vmem [#allocation4], %s237
          %s239 = sadd.s32 %s21, 1
          %s240 = smul.addr %s20, 4
          %s241 = sadd.s32 %s239, %s240
          %s242 = smul.addr %s241, 4
          %s243 = scalar_lea.vmem %s3, %s242
          // Predicated region
          $region70: #{stride_pool1d.1} parent=68 // pred_check
            _
          $region71: #{stride_pool1d.1} parent=68 // pred_check_branch
            %245 = sbr.rel (0) target = $region73
          $region72: #{stride_pool1d.1} parent=68 // pred_region
            // Predicated region
            $region74: #{stride_pool1d.1} parent=72 // pred_check
              _
            $region75: #{stride_pool1d.1} parent=72 // pred_check_branch
              %247 = sbr.rel target = $region77
            $region76: #{stride_pool1d.1} parent=72 // pred_region
              // Predicated region
              $region89: #{stride_pool1d.1} parent=76 // pred_check
                _
              $region90: #{stride_pool1d.1} parent=76 // pred_check_branch
                %264 = sbr.rel (0) target = $region92
              $region91: #{stride_pool1d.1} parent=76 // pred_region
                loop: start=0, step=1, limit=1
                $region93: #{stride_pool1d.1} parent=91 // loop_pre_header
                  _
                $region94: #{stride_pool1d.1} parent=91 // loop_header
                  %s266 = sphi 0, %s270
                  %p267 = scmp.ge.s32.totalorder %s266, 1
                  %s271 = sphi %s243, %s243
                  %s272 = sphi %s238, %s238
                $region95: #{stride_pool1d.1} parent=91 // loop_header_branch
                  %269 = sbr.rel (%p267) target = $region99
                $region96: #{stride_pool1d.1} parent=91 // loop_body
                  _
                $region97: #{stride_pool1d.1} parent=91 // loop_footer
                  %s270 = sadd.s32 1, %s266
                $region98: #{stride_pool1d.1} parent=91 // loop_footer_branch
                  %265 = sbr.rel target = $region94
                $region99: #{stride_pool1d.1} parent=91 // loop_exit
                  _
                loop: start=0, step=1, limit=1
                $region100: #{stride_pool1d.1} parent=91 // loop_pre_header
                  _
                $region101: #{stride_pool1d.1} parent=91 // loop_header
                  %s275 = sphi 0, %s279
                  %p276 = scmp.ge.s32.totalorder %s275, 1
                  %s280 = sphi %s243, %s243
                  %s281 = sphi %s238, %s238
                $region102: #{stride_pool1d.1} parent=91 // loop_header_branch
                  %278 = sbr.rel (%p276) target = $region106
                $region103: #{stride_pool1d.1} parent=91 // loop_body
                  %v282 = vld [vmem:[%s280] sm:$0xf]
                  %283 = vst [vmem:[%s281] sm:$0xf] %v282
                  %v284 = vld [vmem:[%s280 + $0x8] sm:$0xf]
                  %285 = vst [vmem:[%s281 + $0x4] sm:$0xf] %v284
                $region104: #{stride_pool1d.1} parent=91 // loop_footer
                  %s279 = sadd.s32 1, %s275
                $region105: #{stride_pool1d.1} parent=91 // loop_footer_branch
                  %274 = sbr.rel target = $region101
                $region106: #{stride_pool1d.1} parent=91 // loop_exit
                  _
              $region92: #{stride_pool1d.1} parent=76 // pred_fallthru
                _
            $region77: #{stride_pool1d.1} parent=72 // pred_fallthru
              _
            // Predicated region
            $region78: #{stride_pool1d.1} parent=72 // pred_check
              _
            $region79: #{stride_pool1d.1} parent=72 // pred_check_branch
              %249 = sbr.rel (0) target = $region81
            $region80: #{stride_pool1d.1} parent=72 // pred_region
              loop: start=0, step=1, limit=1
              $region82: #{stride_pool1d.1} parent=80 // loop_pre_header
                _
              $region83: #{stride_pool1d.1} parent=80 // loop_header
                %s252 = sphi 0, %s256
                %p253 = scmp.ge.s32.totalorder %s252, 1
                %s257 = sphi %s243, %s243
                %s258 = sphi %s238, %s238
              $region84: #{stride_pool1d.1} parent=80 // loop_header_branch
                %255 = sbr.rel (%p253) target = $region88
              $region85: #{stride_pool1d.1} parent=80 // loop_body
                %v259 = vld [vmem:[%s257] sm:$0xf]
                %260 = vst [vmem:[%s258] sm:$0xf] %v259
                %v261 = vld [vmem:[%s257 + $0x8] sm:$0xf]
                %262 = vst [vmem:[%s258 + $0x4] sm:$0xf] %v261
              $region86: #{stride_pool1d.1} parent=80 // loop_footer
                %s256 = sadd.s32 1, %s252
              $region87: #{stride_pool1d.1} parent=80 // loop_footer_branch
                %251 = sbr.rel target = $region83
              $region88: #{stride_pool1d.1} parent=80 // loop_exit
                _
            $region81: #{stride_pool1d.1} parent=72 // pred_fallthru
              _
          $region73: #{stride_pool1d.1} parent=68 // pred_fallthru
            _
          %286 = vnop
        $region69: #{stride_pool1d.1} parent=23 // pred_fallthru
          _
      $region24: #{stride_pool1d.1} parent=5 // pred_fallthru
        _
      %p287 = scmp.le.s32.totalorder 1, %s13
      %p288 = scmp.lt.s32.totalorder %s13, 3
      %p289 = pnand %p287, %p288
      %p290 = pneg %p289
      // Predicated region
      $region107: #{stride_pool1d.1} parent=5 // pred_check
        _
      $region108: #{stride_pool1d.1} parent=5 // pred_check_branch
        %292 = sbr.rel (%p289) target = $region110
      $region109: #{stride_pool1d.1} parent=5 // pred_region
        %s293 = ssub.s32 %s13, 1
        %s294 = sand.u32 %s82, 1
        %s295 = sand.u32 %s82, 1
        %s296 = smul.addr %s295, 8
        %s297 = scalar_lea.vmem [#allocation3], %s296
        // Predicated region
        $region111: #{stride_pool1d.1} parent=109 // pred_check
          %p298 = pneg %p95
        $region112: #{stride_pool1d.1} parent=109 // pred_check_branch
          %300 = sbr.rel (%p298) target = $region114
        $region113: #{stride_pool1d.1} parent=109 // pred_region
          _
        $region114: #{stride_pool1d.1} parent=109 // pred_fallthru
          _
        %s301 = sand.u32 %s112, 1
        %s302 = sand.u32 %s112, 1
        %s303 = smul.addr %s302, 8
        %s304 = scalar_lea.vmem [#allocation4], %s303
        // Predicated region
        $region115: #{stride_pool1d.1} parent=109 // pred_check
          %p305 = pneg %p125
        $region116: #{stride_pool1d.1} parent=109 // pred_check_branch
          %307 = sbr.rel (%p305) target = $region118
        $region117: #{stride_pool1d.1} parent=109 // pred_region
          _
        $region118: #{stride_pool1d.1} parent=109 // pred_fallthru
          _
        %p308 = pneg %p46
        %p309 = pneg %p43
        %p310 = pneg %p67
        %p311 = pneg %p64
        %s312 = sand.u32 %s82, 1
        %s313 = sand.u32 %s82, 1
        %s314 = smul.addr %s313, 8
        %s315 = scalar_lea.vmem [#allocation3], %s314
        %p316 = pneg %p95
        %p317 = pneg %p92
        %s318 = sand.u32 %s112, 1
        %s319 = sand.u32 %s112, 1
        %s320 = smul.addr %s319, 8
        %s321 = scalar_lea.vmem [#allocation4], %s320
        %p322 = pneg %p125
        %p323 = pneg %p122
        %p324 = pneg %p153
        %p325 = pneg %p150
        %s326 = sand.u32 %s140, 1
        %s327 = scalar_lea.sflag [#allocation6], %s326
        %s328 = sand.u32 %s140, 1
        %s329 = smul.addr %s328, 4
        %s330 = scalar_lea.vmem [#allocation5], %s329
        %s331 = sadd.s32 %s23, 1
        %v332 = vld [vmem:[%s297] sm:$0xf]
        %v333 = vld [vmem:[%s297 + $0x4] sm:$0xf]
        %334 = vst [vmem:[#allocation2] sm:$0xf] %v332
        %335 = vst [vmem:[#allocation2 + $0x8] sm:$0xf] %v333
        %v336 = vld [vmem:[%s304] sm:$0xf]
        %v337 = vld [vmem:[%s304 + $0x4] sm:$0xf]
        %338 = vst [vmem:[#allocation2 + $0x4] sm:$0xf] %v336
        %339 = vst [vmem:[#allocation2 + $0xc] sm:$0xf] %v337
        %v340 = vld [vmem:[#allocation2] sm:$0xf]
        %v341 = vld [vmem:[%s0] sm:$0xf]
        %s342 = scalar_lea.vmem [#allocation2], 8
        %v343 = vld [vmem:[%s342] sm:$0xf]
        %s344 = scalar_lea.vmem %s0, 4
        %v345 = vld [vmem:[%s344] sm:$0xf]
        %vm346 = vcmask 31744
        %v348 = vsel %vm346, %v345, 0
        %vm350 = vcmask 1043456
        %v352 = vsel %vm350, %v343, 0
        %354 = vmatprep.subr.mxu0 0.0
        %355 = vmatpush1.msra.mxu0 %v352
        %356 = vmatprep.subr.mxu0 0.0
        %357 = vmatpush1.msra.mxu0 0.0
        %358 = vmatprep.subr.mxu0 0.0
        %359 = vmatpush1.msra.mxu0 0.0
        %360 = vmatprep.subr.mxu0 0.0
        %361 = vmatpush1.msra.mxu0 0.0
        %362 = vmatprep.subr.mxu0 0.0
        %363 = vmatpush1.msra.mxu0 0.0
        %364 = vmatprep.subr.mxu0 0.0
        %365 = vmatpush1.msra.mxu0 0.0
        %366 = vmatprep.subr.mxu0 0.0
        %367 = vmatpush1.msra.mxu0 0.0
        %368 = vmatprep.subr.mxu0 0.0
        %369 = vmatpush1.msra.mxu0 0.0
        %370 = vmatprep.subr.mxu0 0.0
        %371 = vmatpush1.msra.mxu0 0.0
        %372 = vmatprep.subr.mxu0 0.0
        %373 = vmatpush1.msra.mxu0 0.0
        %374 = vmatprep.subr.mxu0 0.0
        %375 = vmatpush1.msra.mxu0 0.0
        %376 = vmatprep.subr.mxu0 0.0
        %377 = vmatpush1.msra.mxu0 0.0
        %378 = vmatprep.subr.mxu0 0.0
        %379 = vmatpush1.msra.mxu0 0.0
        %380 = vmatprep.subr.mxu0 0.0
        %381 = vmatpush1.msra.mxu0 0.0
        %382 = vmatprep.subr.mxu0 0.0
        %383 = vmatpush1.msra.mxu0 0.0
        %384 = vmatprep.subr.mxu0 0.0
        %385 = vmatpush1.msra.mxu0 0.0
        %386 = vmatprep.subr.mxu0 0.0
        %387 = vmatpush1.msra.mxu0 0.0
        %388 = vmatprep.subr.mxu0 0.0
        %389 = vmatpush1.msra.mxu0 0.0
        %390 = vmatprep.subr.mxu0 0.0
        %391 = vmatpush1.msra.mxu0 0.0
        %392 = vmatprep.subr.mxu0 0.0
        %393 = vmatpush1.msra.mxu0 0.0
        %394 = vmatprep.subr.mxu0 0.0
        %395 = vmatpush1.msra.mxu0 0.0
        %396 = vmatprep.subr.mxu0 0.0
        %397 = vmatpush1.msra.mxu0 0.0
        %398 = vmatprep.subr.mxu0 0.0
        %399 = vmatpush1.msra.mxu0 0.0
        %400 = vmatprep.subr.mxu0 0.0
        %401 = vmatpush1.msra.mxu0 0.0
        %402 = vmatprep.subr.mxu0 0.0
        %403 = vmatpush1.msra.mxu0 0.0
        %404 = vmatprep.subr.mxu0 0.0
        %405 = vmatpush1.msra.mxu0 0.0
        %406 = vmatprep.subr.mxu0 0.0
        %407 = vmatpush1.msra.mxu0 0.0
        %408 = vmatprep.subr.mxu0 0.0
        %409 = vmatpush1.msra.mxu0 0.0
        %410 = vmatprep.subr.mxu0 0.0
        %411 = vmatpush1.msra.mxu0 0.0
        %412 = vmatprep.subr.mxu0 0.0
        %413 = vmatpush1.msra.mxu0 0.0
        %414 = vmatprep.subr.mxu0 0.0
        %415 = vmatpush1.msra.mxu0 0.0
        %416 = vmatprep.subr.mxu0 0.0
        %417 = vmatpush1.msra.mxu0 0.0
        %418 = vmatprep.mubr.f32.mxu0 0.0
        %419 = vmatmul.mubr.f32.gmra.mrb[0].mxu0 %v348
        %v420 = vpop.f32.mrb[0].mxu0
        %v421 = vadd.f32 0.0, %v420
        %v422 = vpop.f32.mrb[0].mxu0
        %423 = vdwg.mxu0
        %v425 = vsel %vm346, %v341, 0
        %v428 = vsel %vm350, %v340, 0
        %430 = vmatprep.subr.mxu0 0.0
        %431 = vmatpush1.msra.mxu0 %v428
        %432 = vmatprep.subr.mxu0 0.0
        %433 = vmatpush1.msra.mxu0 0.0
        %434 = vmatprep.subr.mxu0 0.0
        %435 = vmatpush1.msra.mxu0 0.0
        %436 = vmatprep.subr.mxu0 0.0
        %437 = vmatpush1.msra.mxu0 0.0
        %438 = vmatprep.subr.mxu0 0.0
        %439 = vmatpush1.msra.mxu0 0.0
        %440 = vmatprep.subr.mxu0 0.0
        %441 = vmatpush1.msra.mxu0 0.0
        %442 = vmatprep.subr.mxu0 0.0
        %443 = vmatpush1.msra.mxu0 0.0
        %444 = vmatprep.subr.mxu0 0.0
        %445 = vmatpush1.msra.mxu0 0.0
        %446 = vmatprep.subr.mxu0 0.0
        %447 = vmatpush1.msra.mxu0 0.0
        %448 = vmatprep.subr.mxu0 0.0
        %449 = vmatpush1.msra.mxu0 0.0
        %450 = vmatprep.subr.mxu0 0.0
        %451 = vmatpush1.msra.mxu0 0.0
        %452 = vmatprep.subr.mxu0 0.0
        %453 = vmatpush1.msra.mxu0 0.0
        %454 = vmatprep.subr.mxu0 0.0
        %455 = vmatpush1.msra.mxu0 0.0
        %456 = vmatprep.subr.mxu0 0.0
        %457 = vmatpush1.msra.mxu0 0.0
        %458 = vmatprep.subr.mxu0 0.0
        %459 = vmatpush1.msra.mxu0 0.0
        %460 = vmatprep.subr.mxu0 0.0
        %461 = vmatpush1.msra.mxu0 0.0
        %462 = vmatprep.subr.mxu0 0.0
        %463 = vmatpush1.msra.mxu0 0.0
        %464 = vmatprep.subr.mxu0 0.0
        %465 = vmatpush1.msra.mxu0 0.0
        %466 = vmatprep.subr.mxu0 0.0
        %467 = vmatpush1.msra.mxu0 0.0
        %468 = vmatprep.subr.mxu0 0.0
        %469 = vmatpush1.msra.mxu0 0.0
        %470 = vmatprep.subr.mxu0 0.0
        %471 = vmatpush1.msra.mxu0 0.0
        %472 = vmatprep.subr.mxu0 0.0
        %473 = vmatpush1.msra.mxu0 0.0
        %474 = vmatprep.subr.mxu0 0.0
        %475 = vmatpush1.msra.mxu0 0.0
        %476 = vmatprep.subr.mxu0 0.0
        %477 = vmatpush1.msra.mxu0 0.0
        %478 = vmatprep.subr.mxu0 0.0
        %479 = vmatpush1.msra.mxu0 0.0
        %480 = vmatprep.subr.mxu0 0.0
        %481 = vmatpush1.msra.mxu0 0.0
        %482 = vmatprep.subr.mxu0 0.0
        %483 = vmatpush1.msra.mxu0 0.0
        %484 = vmatprep.subr.mxu0 0.0
        %485 = vmatpush1.msra.mxu0 0.0
        %486 = vmatprep.subr.mxu0 0.0
        %487 = vmatpush1.msra.mxu0 0.0
        %488 = vmatprep.subr.mxu0 0.0
        %489 = vmatpush1.msra.mxu0 0.0
        %490 = vmatprep.subr.mxu0 0.0
        %491 = vmatpush1.msra.mxu0 0.0
        %492 = vmatprep.subr.mxu0 0.0
        %493 = vmatpush1.msra.mxu0 0.0
        %494 = vmatprep.mubr.f32.mxu0 0.0
        %495 = vmatmul.mubr.f32.gmra.mrb[0].mxu0 %v425
        %v496 = vpop.f32.mrb[0].mxu0
        %v497 = vadd.f32 %v421, %v496
        %v498 = vpop.f32.mrb[0].mxu0
        %499 = vdwg.mxu0
        %v500 = vld [vmem:[#allocation2] sm:$0xff]
        %s501 = scalar_lea.vmem %s0, 8
        %v502 = vld [vmem:[%s501] sm:$0xf]
        %v504 = vcombine.high %v500, %v500
        %505 = vrot.lane.b32.xlu0 %v500, 127
        %v506 = vpop.permute.xlu0 %505
        %507 = vrot.lane.b32.xlu0 %v504, 127
        %v508 = vpop.permute.xlu0 %507
        %vm509 = vcmask 1039360
        %v510 = vsel %vm509, %v506, %v508
        %v512 = vsel %vm346, %v502, 0
        %v514 = vsel %vm350, %v510, 0
        %516 = vmatprep.subr.mxu0 0.0
        %517 = vmatpush1.msra.mxu0 %v514
        %518 = vmatprep.subr.mxu0 0.0
        %519 = vmatpush1.msra.mxu0 0.0
        %520 = vmatprep.subr.mxu0 0.0
        %521 = vmatpush1.msra.mxu0 0.0
        %522 = vmatprep.subr.mxu0 0.0
        %523 = vmatpush1.msra.mxu0 0.0
        %524 = vmatprep.subr.mxu0 0.0
        %525 = vmatpush1.msra.mxu0 0.0
        %526 = vmatprep.subr.mxu0 0.0
        %527 = vmatpush1.msra.mxu0 0.0
        %528 = vmatprep.subr.mxu0 0.0
        %529 = vmatpush1.msra.mxu0 0.0
        %530 = vmatprep.subr.mxu0 0.0
        %531 = vmatpush1.msra.mxu0 0.0
        %532 = vmatprep.subr.mxu0 0.0
        %533 = vmatpush1.msra.mxu0 0.0
        %534 = vmatprep.subr.mxu0 0.0
        %535 = vmatpush1.msra.mxu0 0.0
        %536 = vmatprep.subr.mxu0 0.0
        %537 = vmatpush1.msra.mxu0 0.0
        %538 = vmatprep.subr.mxu0 0.0
        %539 = vmatpush1.msra.mxu0 0.0
        %540 = vmatprep.subr.mxu0 0.0
        %541 = vmatpush1.msra.mxu0 0.0
        %542 = vmatprep.subr.mxu0 0.0
        %543 = vmatpush1.msra.mxu0 0.0
        %544 = vmatprep.subr.mxu0 0.0
        %545 = vmatpush1.msra.mxu0 0.0
        %546 = vmatprep.subr.mxu0 0.0
        %547 = vmatpush1.msra.mxu0 0.0
        %548 = vmatprep.subr.mxu0 0.0
        %549 = vmatpush1.msra.mxu0 0.0
        %550 = vmatprep.subr.mxu0 0.0
        %551 = vmatpush1.msra.mxu0 0.0
        %552 = vmatprep.subr.mxu0 0.0
        %553 = vmatpush1.msra.mxu0 0.0
        %554 = vmatprep.subr.mxu0 0.0
        %555 = vmatpush1.msra.mxu0 0.0
        %556 = vmatprep.subr.mxu0 0.0
        %557 = vmatpush1.msra.mxu0 0.0
        %558 = vmatprep.subr.mxu0 0.0
        %559 = vmatpush1.msra.mxu0 0.0
        %560 = vmatprep.subr.mxu0 0.0
        %561 = vmatpush1.msra.mxu0 0.0
        %562 = vmatprep.subr.mxu0 0.0
        %563 = vmatpush1.msra.mxu0 0.0
        %564 = vmatprep.subr.mxu0 0.0
        %565 = vmatpush1.msra.mxu0 0.0
        %566 = vmatprep.subr.mxu0 0.0
        %567 = vmatpush1.msra.mxu0 0.0
        %568 = vmatprep.subr.mxu0 0.0
        %569 = vmatpush1.msra.mxu0 0.0
        %570 = vmatprep.subr.mxu0 0.0
        %571 = vmatpush1.msra.mxu0 0.0
        %572 = vmatprep.subr.mxu0 0.0
        %573 = vmatpush1.msra.mxu0 0.0
        %574 = vmatprep.subr.mxu0 0.0
        %575 = vmatpush1.msra.mxu0 0.0
        %576 = vmatprep.subr.mxu0 0.0
        %577 = vmatpush1.msra.mxu0 0.0
        %578 = vmatprep.subr.mxu0 0.0
        %579 = vmatpush1.msra.mxu0 0.0
        %580 = vmatprep.mubr.f32.mxu0 0.0
        %581 = vmatmul.mubr.f32.gmra.mrb[0].mxu0 %v512
        %v582 = vpop.f32.mrb[0].mxu0
        %v583 = vadd.f32 0.0, %v582
        %v584 = vpop.f32.mrb[0].mxu0
        %585 = vdwg.mxu0
        %v586 = vadd.f32 %v497, %v583
        %v587 = vld [vmem:[%s1] sm:$0xf]
        %589 = vset.pattern.permute.xlu0 0
        %590 = vperm.xlu0 %589, %v587
        %v591 = vpop.permute.xlu0 %590
        %v593 = vadd.f32 %v586, %v591
        %v594 = vmax.f32 %v593, 0.0
        %595 = vst [vmem:[%s330] sm:$0xf] %v594
        %s596 = sand.u32 %s140, 1
        %s597 = scalar_lea.sflag [#allocation6], %s596
        %s598 = sand.u32 %s140, 1
        %s599 = smul.addr %s598, 4
        %s600 = scalar_lea.vmem [#allocation5], %s599
        // Predicated region
        $region119: #{stride_pool1d.1} parent=109 // pred_check
          %p601 = pneg %p150
        $region120: #{stride_pool1d.1} parent=109 // pred_check_branch
          %603 = sbr.rel (%p601) target = $region122
        $region121: #{stride_pool1d.1} parent=109 // pred_region
          %s605 = ssub.s32 64, 64
          %606 = vsyncadd %s597, %s605
          %s607 = sadd.s32 %s23, %s22
          %s608 = smul.addr %s607, 64
          %s609 = scalar_lea.hbm %s4, %s608
          %s611 = sshll.u32 %s600, 4
          %s612 = int_to_ptr.vmem [resolvable:$true] %s611
          %614 = dma.vmem_to_hbm [thread:$0]  %s612, 64, %s609, %s597
        $region122: #{stride_pool1d.1} parent=109 // pred_fallthru
          _
      $region110: #{stride_pool1d.1} parent=5 // pred_fallthru
        _
      %p615 = scmp.le.s32.totalorder 2, %s13
      // Predicated region
      $region123: #{stride_pool1d.1} parent=5 // pred_check
        %p616 = pneg %p615
      $region124: #{stride_pool1d.1} parent=5 // pred_check_branch
        %618 = sbr.rel (%p616) target = $region126
      $region125: #{stride_pool1d.1} parent=5 // pred_region
        %s619 = ssub.s32 %s13, 2
        // Predicated region
        $region127: #{stride_pool1d.1} parent=125 // pred_check
          %p620 = pneg %p156
        $region128: #{stride_pool1d.1} parent=125 // pred_check_branch
          %622 = sbr.rel (%p620) target = $region130
        $region129: #{stride_pool1d.1} parent=125 // pred_region
          %s623 = sand.u32 %s141, 1
          %s624 = scalar_lea.sflag [#allocation6], %s623
          %s625 = sand.u32 %s141, 1
          %s626 = smul.addr %s625, 4
          %s627 = scalar_lea.vmem [#allocation5], %s626
          %628 = dma.done %s624, 64
        $region130: #{stride_pool1d.1} parent=125 // pred_fallthru
          _
      $region126: #{stride_pool1d.1} parent=5 // pred_fallthru
        _
    $region6: #{stride_pool1d.1} parent=1 // loop_footer
      %s17 = sadd.s32 1, %s13
    $region7: #{stride_pool1d.1} parent=1 // loop_footer_branch
      %12 = sbr.rel target = $region3
    $region8: #{stride_pool1d.1} parent=1 // loop_exit
      _
    %629 = vsyncpa [#allocation6], 1
    %s630 = scalar_lea.sflag [#allocation6], 1
    %631 = vsyncpa %s630, 1

</llo_original>
